<compile_context>
chip_gen: v6e
topology: v6e:2x2x1
jax: 0.10.0
libtpu: 0.0.40
codegen_flags: <defaults>
</compile_context>

<pallas_src>
import functools

import jax
import jax.numpy as jnp
from jax import lax
from jax.experimental import pallas as pl
from jax.experimental.pallas import tpu as pltpu


_NS_MASK = 4   # per-row: focal_sum, sum(p*t), sum(p), sum(t)
_NS_SIM = 4    # per-row: sum(p*s), sum(t*s), ||p||^2, ||s||^2   (||t||^2 == sum(t): binary)


def _round_up(x, m):
    return (x + m - 1) // m * m


# ----------------------------------------------------------------------------
# Fused Pallas kernel
# ----------------------------------------------------------------------------
def _fused_loss_kernel(*refs, alpha, gamma, d_valid, td, sub, tiles_per_chunk,
                       tiles_total, with_sim, needs_mask):
    """Accumulates per-row loss statistics over feature tiles.

    inputs (per tile): src [M, td] logits, tgt [M, td] binary, (sen [M, td])
    output: stats [M, NS] f32, VMEM-resident across the tile (reduction) axis.
    """
    if with_sim:
        src_ref, tgt_ref, sen_ref, stats_ref = refs
    else:
        src_ref, tgt_ref, stats_ref = refs
        sen_ref = None

    c = pl.program_id(0)            # D-chunk axis (size 1 on single-TC parts)
    j = pl.program_id(2)            # innermost (reduction) axis

    @pl.when(j == 0)
    def _init():
        stats_ref[...] = jnp.zeros_like(stats_ref)

    m_rows = src_ref.shape[0]
    ns = stats_ref.shape[1]
    n_sub = td // sub

    def accumulate(apply_mask):
        # element offset of this tile along D (only needed for masking)
        tile_start = (c * tiles_per_chunk + j) * td
        parts = [jnp.zeros((m_rows, 1), jnp.float32) for _ in range(ns)]
        for si in range(n_sub):                        # static sub-tiling: bounds
            s0 = si * sub                              # live vregs per slice
            x = src_ref[:, s0:s0 + sub].astype(jnp.float32)
            t = tgt_ref[:, s0:s0 + sub].astype(jnp.float32)
            s = sen_ref[:, s0:s0 + sub].astype(jnp.float32) if with_sim else None

            if apply_mask:
                # Partial last tile: block contents past D are undefined, so mask
                # the INPUTS before the exp/log chain (keeps everything finite).
                col = lax.broadcasted_iota(jnp.int32, x.shape, 1) + (tile_start + s0)
                valid = col < d_valid
                x = jnp.where(valid, x, 0.0)
                t = jnp.where(valid, t, 0.0)
                if with_sim:
                    s = jnp.where(valid, s, 0.0)

            # one transcendental chain shared by sigmoid and stable BCE-with-logits
            e = jnp.exp(-jnp.abs(x))                            # EUP exp
            inv_1pe = pl.reciprocal(1.0 + e, approx=True)       # EUP vrcp
            p = jnp.where(x >= 0.0, inv_1pe, e * inv_1pe)       # == sigmoid(x)
            ce = jnp.maximum(x, 0.0) - x * t + jnp.log1p(e)

            pt = p * t
            q = p + t - 2.0 * pt                                # == 1 - p_t
            if gamma == 2.0:
                focal = ce * (q * q)
            else:
                focal = ce * jnp.power(jnp.maximum(q, 1e-12), gamma)
            if alpha >= 0:
                focal = focal * ((1.0 - alpha) + (2.0 * alpha - 1.0) * t)

            if apply_mask:
                # focal(0,0) != 0 and p(0) = 0.5: zero their padded-column share.
                focal = jnp.where(valid, focal, 0.0)
                p = jnp.where(valid, p, 0.0)
                # pt / t / s-based terms already zero on padded columns.

            cols = [focal, pt, p, t]
            if with_sim:
                cols += [p * s, t * s, p * p, s * s]
            for k, v in enumerate(cols):
                parts[k] = parts[k] + jnp.sum(v, axis=1, keepdims=True)

        # single fused accumulator update per tile
        stats_ref[...] += jnp.concatenate(parts, axis=1)

    if needs_mask:
        tile_idx = c * tiles_per_chunk + j
        is_partial = tile_idx == (tiles_total - 1)

        @pl.when(is_partial)
        def _masked():
            accumulate(True)

        @pl.when(jnp.logical_not(is_partial))
        def _plain():
            accumulate(False)
    else:
        accumulate(False)


# ----------------------------------------------------------------------------
# Pallas wrapper
# ----------------------------------------------------------------------------
def fused_mask_sim_stats(src, tgt, sen=None, *, focal_alpha=0.25, gamma=2.0):
    """src/tgt[/sen]: [G, M, D].  Returns per-row loss statistics [G, M, NS] f32."""
    assert src.ndim == 3 and src.shape == tgt.shape
    with_sim = sen is not None
    if with_sim:
        assert sen.shape == src.shape
    G, M, D = src.shape
    inputs = (src, tgt) + ((sen,) if with_sim else ())
    ns = _NS_MASK + (_NS_SIM if with_sim else 0)

    # --- generation-aware sizing (safe fallbacks if introspection fails) -------
    vmem_phys = 64 << 20
    device_kind = ""
    try:
        device_kind = getattr(jax.devices()[0], "device_kind", "") or ""
    except Exception:
        pass
    try:
        info = pltpu.get_tpu_info()
        vmem_phys = int(getattr(info, "vmem_capacity_bytes", vmem_phys))
    except Exception:
        pass
    # scoped-VMEM target: ~half physical, capped at 64 MiB (32 MiB on 64 MiB parts)
    hard_cap = int(min(max(vmem_phys // 2, 16 << 20), 64 << 20))
    td_max = 16384 if vmem_phys > (96 << 20) else 8192

    # Feature-axis tile: multiple of 128, sized so double-buffered inputs fit.
    bytes_per_lane = sum(2 * M * jnp.dtype(a.dtype).itemsize for a in inputs)
    input_budget = max(hard_cap - (4 << 20), 4 << 20)
    td_budget = max(128, (input_budget // max(bytes_per_lane, 1)) // 128 * 128)
    td = int(min(td_max, td_budget, _round_up(D, 128)))
    # sub-tile width bounding in-kernel f32 temporaries (vreg pressure)
    sub = 512 if td % 512 == 0 else (256 if td % 256 == 0 else 128)

    tiles_total = pl.cdiv(D, td)
    needs_mask = (D % td) != 0

    # 2-way D split only on dual-TensorCore parts (v7x) and only when it creates
    # no phantom tiles; single-TC parts (v5e/v6e) run unchunked.
    is_multi_tc = "v7" in device_kind.lower()
    num_chunks = 2 if (is_multi_tc and tiles_total >= 2 and tiles_total % 2 == 0) else 1
    tiles_per_chunk = tiles_total // num_chunks

    kernel = functools.partial(
        _fused_loss_kernel, alpha=float(focal_alpha), gamma=float(gamma),
        d_valid=D, td=td, sub=sub, tiles_per_chunk=tiles_per_chunk,
        tiles_total=tiles_total, with_sim=with_sim, needs_mask=needs_mask)

    def in_map(c, g, j):
        return (g, 0, c * tiles_per_chunk + j)

    in_specs = [pl.BlockSpec((None, M, td), in_map) for _ in inputs]
    out_specs = pl.BlockSpec((None, None, M, ns), lambda c, g, j: (c, g, 0, 0))

    block_bytes = bytes_per_lane * td              # already x2 for double-buffering
    vmem_limit = int(min(max(block_bytes + 2 * M * ns * 4 + (4 << 20), 8 << 20),
                         hard_cap))

    stats = pl.pallas_call(
        kernel,
        grid=(num_chunks, G, tiles_per_chunk),
        out_shape=jax.ShapeDtypeStruct((num_chunks, G, M, ns), jnp.float32),
        in_specs=in_specs,
        out_specs=out_specs,
        compiler_params=pltpu.CompilerParams(
            dimension_semantics=("parallel", "parallel", "arbitrary"),
            vmem_limit_bytes=vmem_limit),
    )(*inputs)
    if num_chunks == 1:
        return stats[0]                            # [G, M, NS]
    return stats.sum(axis=0)                       # tiny cross-chunk reduce in JAX


# ----------------------------------------------------------------------------
# SetCriterion (JAX glue) + deterministic stand-in matcher
# ----------------------------------------------------------------------------
def simple_mask_matcher(outputs, targets):
    """Deterministic stand-in for the Hungarian matcher: for each batch element
    match the single referred object (tgt index 0) to the query whose sigmoid
    mask has the largest overlap with the GT mask."""
    # TODO(synk): replace with the real Hungarian matcher (scipy linear_sum_assignment).
    pred_masks = outputs['pred_masks']                      # [B, T, NQ, H, W]
    indices = []
    for b, t in enumerate(targets):
        pm = jax.nn.sigmoid(pred_masks[b])                  # [T, NQ, H, W]
        tm = t['masks'][:, None].astype(pm.dtype)           # [T, 1, H, W]
        score = jnp.sum(pm * tm, axis=(0, 2, 3))            # [NQ]
        src = jnp.argmax(score).astype(jnp.int32)[None]
        tgt = jnp.zeros((1,), jnp.int32)
        indices.append((src, tgt))
    return indices


class SetCriterionPallas:
    def __init__(self, num_classes, matcher, weight_dict, eos_coef, losses,
                 focal_alpha=0.25, input_dtype=jnp.bfloat16):
        self.num_classes = num_classes
        self.matcher = matcher
        self.weight_dict = weight_dict
        self.eos_coef = eos_coef
        self.losses = losses
        self.focal_alpha = focal_alpha
        self.mask_out_stride = 1
        # compact streaming dtype for logits / sentence features (binary targets
        # are exact in bf16); all in-kernel math is f32
        self.input_dtype = input_dtype
        # kept for parity with the PyTorch module (unused by mask/sim losses)
        self.empty_weight = jnp.ones((num_classes + 1,), jnp.float32).at[-1].set(eos_coef)

    # ----- helpers ----------------------------------------------------------
    def _get_src_permutation_idx(self, indices):
        batch_idx = jnp.concatenate(
            [jnp.full_like(src, i) for i, (src, _) in enumerate(indices)])
        src_idx = jnp.concatenate([src for src, _ in indices])
        return batch_idx, src_idx

    def _gather_masks(self, outputs, targets, indices):
        batch_idx, src_idx = self._get_src_permutation_idx(indices)
        src_masks = outputs['pred_masks']                   # [B, T, NQ, H, W]
        src_masks = jnp.swapaxes(src_masks, 1, 2)           # [B, NQ, T, H, W]
        target_masks = jnp.stack([t['masks'] for t in targets], axis=0)  # [B, T, H, W]
        start = self.mask_out_stride // 2
        target_masks = target_masks[:, :, start::self.mask_out_stride,
                                    start::self.mask_out_stride]
        src_sel = src_masks[batch_idx, src_idx]             # [num_matched, T, H, W]
        return src_sel, target_masks

    def _flatten_for_kernel(self, outputs, targets, indices, with_sim):
        # NOTE: like the reference loss_sim, assumes num_matched == batch size
        # (one referred object per sample) so matched rows align with target rows.
        src_sel, target_masks = self._gather_masks(outputs, targets, indices)
        n, t, h, w = src_sel.shape
        d = h * w
        # casts fuse into the gather/reshape, so the kernel streams compact bf16
        src = src_sel.reshape(n * t, d).astype(self.input_dtype)
        tgt = target_masks.reshape(-1, d).astype(self.input_dtype)   # binary: exact
        sen = (outputs['sen_feat'].reshape(-1, d).astype(self.input_dtype)
               if with_sim else None)
        return src, tgt, sen, (n, t, d)

    def _losses_from_stats(self, stats, dims, num_boxes, wanted):
        n, t, d = dims
        losses = {}
        if 'masks' in wanted:
            focal_total = jnp.sum(stats[:, 0]) / (t * d)    # mean over T*H*W, sum over inst
            per_inst = stats[:, 1:4].reshape(n, t, 3).sum(axis=1)
            inter, sum_p, sum_t = per_inst[:, 0], per_inst[:, 1], per_inst[:, 2]
            dice = 1.0 - (2.0 * inter + 1.0) / (sum_p + sum_t + 1.0)
            losses['loss_mask'] = focal_total / num_boxes
            losses['loss_dice'] = jnp.sum(dice) / num_boxes
        if 'sim' in wanted:
            eps = 1e-8
            # stats[:,3] == sum(t) == ||t||^2 only for exactly-binary targets.
            nt2 = stats[:, 3]
            dxs, dts, nx2, ns2 = stats[:, 4], stats[:, 5], stats[:, 6], stats[:, 7]
            ns_ = jnp.maximum(jnp.sqrt(ns2), eps)
            cos_x = dxs / (jnp.maximum(jnp.sqrt(nx2), eps) * ns_)
            cos_t = dts / (jnp.maximum(jnp.sqrt(nt2), eps) * ns_)
            losses['loss_sim'] = jnp.mean((cos_x - cos_t) ** 2)
        return losses

    # ----- individual losses (API parity; forward uses the fused/batched path) -----
    def loss_masks(self, outputs, targets, indices, num_boxes):
        src, tgt, _, dims = self._flatten_for_kernel(outputs, targets, indices, False)
        stats = fused_mask_sim_stats(src[None], tgt[None], None,
                                     focal_alpha=self.focal_alpha)[0]
        return self._losses_from_stats(stats, dims, num_boxes, wanted=('masks',))

    def loss_sim(self, outputs, targets, indices, num_boxes):
        src, tgt, sen, dims = self._flatten_for_kernel(outputs, targets, indices, True)
        stats = fused_mask_sim_stats(src[None], tgt[None], sen[None],
                                     focal_alpha=self.focal_alpha)[0]
        return self._losses_from_stats(stats, dims, num_boxes, wanted=('sim',))

    def get_loss(self, loss, outputs, targets, indices, num_boxes, **kwargs):
        loss_map = {'masks': self.loss_masks, 'sim': self.loss_sim}
        assert loss in loss_map, f'do you really want to compute {loss} loss?'
        return loss_map[loss](outputs, targets, indices, num_boxes, **kwargs)

    # ----- forward ----------------------------------------------------------
    def forward(self, outputs, targets):
        outputs_without_aux = {k: v for k, v in outputs.items() if k != 'aux_outputs'}
        indices = self.matcher(outputs_without_aux, targets)
        target_valid = jnp.stack([t['valid'] for t in targets], axis=0).reshape(-1)
        # TODO(synk): distributed all_reduce / world-size scaling omitted (single host).
        num_boxes = jnp.maximum(target_valid.sum().astype(jnp.float32), 1.0)

        with_sim = 'sim' in self.losses
        sets = [(outputs_without_aux, indices)]
        if 'aux_outputs' in outputs:
            for aux in outputs['aux_outputs']:
                sets.append((aux, self.matcher(aux, targets)))

        # one gather per prediction set (matching differs per set), then a SINGLE
        # fused pallas_call batched over main + aux layers: one HBM pass produces
        # focal/dice/sim statistics for every layer at once.
        src_l, tgt_l, sen_l, dims = [], [], [], None
        for out_i, ind_i in sets:
            s, tm, sn, dims = self._flatten_for_kernel(out_i, targets, ind_i, with_sim)
            src_l.append(s)
            tgt_l.append(tm)
            if with_sim:
                sen_l.append(sn)
        src = jnp.stack(src_l, axis=0)
        tgt = jnp.stack(tgt_l, axis=0)
        sen = jnp.stack(sen_l, axis=0) if with_sim else None
        all_stats = fused_mask_sim_stats(src, tgt, sen,
                                         focal_alpha=self.focal_alpha)   # [G, M, NS]

        losses = {}
        for g in range(len(sets)):
            l_dict = self._losses_from_stats(all_stats[g], dims, num_boxes,
                                             wanted=self.losses)
            if g == 0:
                losses.update(l_dict)
            else:
                losses.update({k + f'_{g - 1}': v for k, v in l_dict.items()})
        return losses


# ----------------------------------------------------------------------------
# main
# ----------------------------------------------------------------------------
if __name__ == "__main__":
    import numpy as np

    key = jax.random.PRNGKey(0)
    B, T, NQ, H, W = 2, 4, 5, 16, 16
    k1, k2, k3, k4, k5 = jax.random.split(key, 5)

    pred_masks = jax.random.normal(k1, (B, T, NQ, H, W), jnp.float32)   # logits
    sen_feat = jax.random.normal(k2, (B, T, H * W), jnp.float32)
    gt_masks = (jax.random.uniform(k3, (B, T, H, W)) > 0.5).astype(jnp.float32)
    valid = jnp.ones((B, T), jnp.int32)

    aux_outputs = [
        {'pred_masks': jax.random.normal(k4, (B, T, NQ, H, W), jnp.float32),
         'sen_feat': sen_feat},
        {'pred_masks': jax.random.normal(k5, (B, T, NQ, H, W), jnp.float32),
         'sen_feat': sen_feat},
    ]
    outputs = {'pred_masks': pred_masks, 'sen_feat': sen_feat,
               'aux_outputs': aux_outputs}
    targets = [{'masks': gt_masks[b], 'valid': valid[b],
                'labels': jnp.zeros((1,), jnp.int32)} for b in range(B)]

    criterion = SetCriterionPallas(
        num_classes=1,
        matcher=simple_mask_matcher,
        weight_dict={'loss_mask': 2.0, 'loss_dice': 5.0, 'loss_sim': 1.0},
        eos_coef=0.1,
        losses=['masks', 'sim'],
        focal_alpha=0.25)

    losses = criterion.forward(outputs, targets)
    losses = jax.tree_util.tree_map(jax.block_until_ready, losses)

    # ---- numerical check of the main layer against pure JAX ----------------
    # The reference quantizes logits/sen_feat to the same streaming dtype the
    # kernel reads (bf16); remaining differences come from the EUP approximate
    # reciprocal inside the kernel sigmoid -> rtol=2e-2.
    def ref_losses(outputs, targets):
        idx = criterion.matcher(
            {k: v for k, v in outputs.items() if k != 'aux_outputs'}, targets)
        src_sel, tgt_m = criterion._gather_masks(outputs, targets, idx)
        n, t, h, w = src_sel.shape
        num_boxes = jnp.maximum(
            jnp.stack([tr['valid'] for tr in targets]).reshape(-1).sum().astype(jnp.float32), 1.0)
        qd = criterion.input_dtype
        x = src_sel.astype(qd).astype(jnp.float32).reshape(n, t * h * w)
        tt = tgt_m.astype(qd).astype(jnp.float32).reshape(n, t * h * w)
        p = jax.nn.sigmoid(x)
        ce = jnp.maximum(x, 0.0) - x * tt + jnp.log1p(jnp.exp(-jnp.abs(x)))
        p_t = p * tt + (1 - p) * (1 - tt)
        fl = (0.25 * tt + 0.75 * (1 - tt)) * ce * (1 - p_t) ** 2
        loss_mask = fl.mean(1).sum() / num_boxes
        dice = 1 - (2 * (p * tt).sum(1) + 1) / (p.sum(1) + tt.sum(1) + 1)
        loss_dice = dice.sum() / num_boxes
        xs = jax.nn.sigmoid(src_sel.astype(qd).astype(jnp.float32).reshape(n * t, h * w))
        ts = tgt_m.astype(qd).astype(jnp.float32).reshape(n * t, h * w)
        ss = outputs['sen_feat'].astype(qd).astype(jnp.float32).reshape(n * t, h * w)

        def cos(a, b):
            return (a * b).sum(1) / (jnp.maximum(jnp.linalg.norm(a, axis=1), 1e-8) *
                                     jnp.maximum(jnp.linalg.norm(b, axis=1), 1e-8))

        loss_sim = jnp.mean((cos(xs, ss) - cos(ts, ss)) ** 2)
        return {'loss_mask': loss_mask, 'loss_dice': loss_dice, 'loss_sim': loss_sim}

    ref = ref_losses(outputs, targets)
    for k in ('loss_mask', 'loss_dice', 'loss_sim'):
        np.testing.assert_allclose(np.asarray(losses[k]), np.asarray(ref[k]),
                                   rtol=2e-2, atol=1e-4)

    print("KERNEL_OK")
</pallas_src>

<mosaic_0001>
module attributes {stable_mosaic.version = 11 : i64} {
  func.func @_fused_loss_kernel(%arg0: i32, %arg1: i32, %arg2: i32, %arg3: memref<1x8x256xbf16, #tpu.memory_space<vmem>>, %arg4: memref<1x8x256xbf16, #tpu.memory_space<vmem>>, %arg5: memref<1x8x256xbf16, #tpu.memory_space<vmem>>, %arg6: memref<1x1x8x8xf32, #tpu.memory_space<vmem>>) attributes {dimension_semantics = [#tpu.dimension_semantics<parallel>, #tpu.dimension_semantics<parallel>, #tpu.dimension_semantics<arbitrary>], iteration_bounds = array<i64: 1, 3, 1>, scalar_prefetch = 0 : i64, scratch_operands = 0 : i64, tpu.core_type = #tpu.core_type<tc>, window_params = [{transform_indices = @transform_0, window_bounds = array<i64: 1, 8, 256>}, {transform_indices = @transform_1, window_bounds = array<i64: 1, 8, 256>}, {transform_indices = @transform_2, window_bounds = array<i64: 1, 8, 256>}, {transform_indices = @transform_3, window_bounds = array<i64: 1, 1, 8, 8>}]} {
    %c0_i32 = arith.constant 0 : i32
    %0 = arith.cmpi eq, %arg2, %c0_i32 : i32
    %1 = arith.extui %0 : i1 to i32
    %c0_i32_0 = arith.constant 0 : i32
    %2 = arith.cmpi ne, %1, %c0_i32_0 : i32
    scf.if %2 {
      %cst_39 = arith.constant 0.000000e+00 : f32
      %84 = vector.broadcast %cst_39 : f32 to vector<8x8xf32>
      %c0_40 = arith.constant 0 : index
      %c0_41 = arith.constant 0 : index
      %c0_42 = arith.constant 0 : index
      %c0_43 = arith.constant 0 : index
      %85 = vector.load %arg6[%c0_40, %c0_41, %c0_42, %c0_43] : memref<1x1x8x8xf32, #tpu.memory_space<vmem>>, vector<1x1x8x8xf32>
      %86 = vector.shape_cast %85 : vector<1x1x8x8xf32> to vector<8x8xf32>
      %87 = vector.shape_cast %84 : vector<8x8xf32> to vector<1x1x8x8xf32>
      tpu.vector_store %arg6[%c0_40, %c0_41, %c0_42, %c0_43], %87 {strides = array<i32>} : memref<1x1x8x8xf32, #tpu.memory_space<vmem>>, vector<1x1x8x8xf32>,
    } else {
    }
    %cst = arith.constant 0.000000e+00 : f32
    %3 = vector.broadcast %cst : f32 to vector<8x1xf32>
    %cst_1 = arith.constant 0.000000e+00 : f32
    %4 = vector.broadcast %cst_1 : f32 to vector<8x1xf32>
    %cst_2 = arith.constant 0.000000e+00 : f32
    %5 = vector.broadcast %cst_2 : f32 to vector<8x1xf32>
    %cst_3 = arith.constant 0.000000e+00 : f32
    %6 = vector.broadcast %cst_3 : f32 to vector<8x1xf32>
    %cst_4 = arith.constant 0.000000e+00 : f32
    %7 = vector.broadcast %cst_4 : f32 to vector<8x1xf32>
    %cst_5 = arith.constant 0.000000e+00 : f32
    %8 = vector.broadcast %cst_5 : f32 to vector<8x1xf32>
    %cst_6 = arith.constant 0.000000e+00 : f32
    %9 = vector.broadcast %cst_6 : f32 to vector<8x1xf32>
    %cst_7 = arith.constant 0.000000e+00 : f32
    %10 = vector.broadcast %cst_7 : f32 to vector<8x1xf32>
    %c0 = arith.constant 0 : index
    %c0_8 = arith.constant 0 : index
    %c0_9 = arith.constant 0 : index
    %11 = vector.load %arg3[%c0, %c0_8, %c0_9] : memref<1x8x256xbf16, #tpu.memory_space<vmem>>, vector<1x8x256xbf16>
    %12 = vector.shape_cast %11 : vector<1x8x256xbf16> to vector<8x256xbf16>
    %13 = arith.extf %12 : vector<8x256xbf16> to vector<8x256xf32>
    %c0_10 = arith.constant 0 : index
    %c0_11 = arith.constant 0 : index
    %c0_12 = arith.constant 0 : index
    %14 = vector.load %arg4[%c0_10, %c0_11, %c0_12] : memref<1x8x256xbf16, #tpu.memory_space<vmem>>, vector<1x8x256xbf16>
    %15 = vector.shape_cast %14 : vector<1x8x256xbf16> to vector<8x256xbf16>
    %16 = arith.extf %15 : vector<8x256xbf16> to vector<8x256xf32>
    %c0_13 = arith.constant 0 : index
    %c0_14 = arith.constant 0 : index
    %c0_15 = arith.constant 0 : index
    %17 = vector.load %arg5[%c0_13, %c0_14, %c0_15] : memref<1x8x256xbf16, #tpu.memory_space<vmem>>, vector<1x8x256xbf16>
    %18 = vector.shape_cast %17 : vector<1x8x256xbf16> to vector<8x256xbf16>
    %19 = arith.extf %18 : vector<8x256xbf16> to vector<8x256xf32>
    %20 = math.absf %13 : vector<8x256xf32>
    %cst_16 = arith.constant 0.000000e+00 : f32
    %21 = vector.broadcast %cst_16 : f32 to vector<8x256xf32>
    %22 = arith.subf %21, %20 : vector<8x256xf32>
    %23 = math.exp %22 : vector<8x256xf32>
    %cst_17 = arith.constant 1.000000e+00 : f32
    %24 = vector.broadcast %cst_17 : f32 to vector<8x256xf32>
    %25 = arith.addf %24, %23 : vector<8x256xf32>
    %26 = tpu.reciprocal %25 {approx = true} : vector<8x256xf32> -> vector<8x256xf32>
    %cst_18 = arith.constant 0.000000e+00 : f32
    %27 = vector.broadcast %cst_18 : f32 to vector<8x256xf32>
    %28 = arith.cmpf oge, %13, %27 : vector<8x256xf32>
    %29 = arith.mulf %23, %26 : vector<8x256xf32>
    %30 = arith.select %28, %26, %29 : vector<8x256xi1>, vector<8x256xf32>
    %cst_19 = arith.constant 0.000000e+00 : f32
    %31 = vector.broadcast %cst_19 : f32 to vector<8x256xf32>
    %32 = arith.maximumf %13, %31 : vector<8x256xf32>
    %33 = arith.mulf %13, %16 : vector<8x256xf32>
    %34 = arith.subf %32, %33 : vector<8x256xf32>
    %35 = math.log1p %23 : vector<8x256xf32>
    %36 = arith.addf %34, %35 : vector<8x256xf32>
    %37 = arith.mulf %30, %16 : vector<8x256xf32>
    %38 = arith.addf %30, %16 : vector<8x256xf32>
    %cst_20 = arith.constant 2.000000e+00 : f32
    %39 = vector.broadcast %cst_20 : f32 to vector<8x256xf32>
    %40 = arith.mulf %39, %37 : vector<8x256xf32>
    %41 = arith.subf %38, %40 : vector<8x256xf32>
    %42 = arith.mulf %41, %41 : vector<8x256xf32>
    %43 = arith.mulf %36, %42 : vector<8x256xf32>
    %cst_21 = arith.constant -5.000000e-01 : f32
    %44 = vector.broadcast %cst_21 : f32 to vector<8x256xf32>
    %45 = arith.mulf %44, %16 : vector<8x256xf32>
    %cst_22 = arith.constant 7.500000e-01 : f32
    %46 = vector.broadcast %cst_22 : f32 to vector<8x256xf32>
    %47 = arith.addf %46, %45 : vector<8x256xf32>
    %48 = arith.mulf %43, %47 : vector<8x256xf32>
    %49 = arith.mulf %30, %19 : vector<8x256xf32>
    %50 = arith.mulf %16, %19 : vector<8x256xf32>
    %51 = arith.mulf %30, %30 : vector<8x256xf32>
    %52 = arith.mulf %19, %19 : vector<8x256xf32>
    %cst_23 = arith.constant dense<0.000000e+00> : vector<8xf32>
    %53 = vector.multi_reduction <add>, %48, %cst_23 [1] : vector<8x256xf32> to vector<8xf32>
    %54 = vector.shape_cast %53 : vector<8xf32> to vector<8x1xf32>
    %55 = arith.addf %3, %54 : vector<8x1xf32>
    %cst_24 = arith.constant dense<0.000000e+00> : vector<8xf32>
    %56 = vector.multi_reduction <add>, %37, %cst_24 [1] : vector<8x256xf32> to vector<8xf32>
    %57 = vector.shape_cast %56 : vector<8xf32> to vector<8x1xf32>
    %58 = arith.addf %4, %57 : vector<8x1xf32>
    %cst_25 = arith.constant dense<0.000000e+00> : vector<8xf32>
    %59 = vector.multi_reduction <add>, %30, %cst_25 [1] : vector<8x256xf32> to vector<8xf32>
    %60 = vector.shape_cast %59 : vector<8xf32> to vector<8x1xf32>
    %61 = arith.addf %5, %60 : vector<8x1xf32>
    %cst_26 = arith.constant dense<0.000000e+00> : vector<8xf32>
    %62 = vector.multi_reduction <add>, %16, %cst_26 [1] : vector<8x256xf32> to vector<8xf32>
    %63 = vector.shape_cast %62 : vector<8xf32> to vector<8x1xf32>
    %64 = arith.addf %6, %63 : vector<8x1xf32>
    %cst_27 = arith.constant dense<0.000000e+00> : vector<8xf32>
    %65 = vector.multi_reduction <add>, %49, %cst_27 [1] : vector<8x256xf32> to vector<8xf32>
    %66 = vector.shape_cast %65 : vector<8xf32> to vector<8x1xf32>
    %67 = arith.addf %7, %66 : vector<8x1xf32>
    %cst_28 = arith.constant dense<0.000000e+00> : vector<8xf32>
    %68 = vector.multi_reduction <add>, %50, %cst_28 [1] : vector<8x256xf32> to vector<8xf32>
    %69 = vector.shape_cast %68 : vector<8xf32> to vector<8x1xf32>
    %70 = arith.addf %8, %69 : vector<8x1xf32>
    %cst_29 = arith.constant dense<0.000000e+00> : vector<8xf32>
    %71 = vector.multi_reduction <add>, %51, %cst_29 [1] : vector<8x256xf32> to vector<8xf32>
    %72 = vector.shape_cast %71 : vector<8xf32> to vector<8x1xf32>
    %73 = arith.addf %9, %72 : vector<8x1xf32>
    %cst_30 = arith.constant dense<0.000000e+00> : vector<8xf32>
    %74 = vector.multi_reduction <add>, %52, %cst_30 [1] : vector<8x256xf32> to vector<8xf32>
    %75 = vector.shape_cast %74 : vector<8xf32> to vector<8x1xf32>
    %76 = arith.addf %10, %75 : vector<8x1xf32>
    %c0_31 = arith.constant 0 : index
    %c0_32 = arith.constant 0 : index
    %c0_33 = arith.constant 0 : index
    %c0_34 = arith.constant 0 : index
    %77 = vector.load %arg6[%c0_31, %c0_32, %c0_33, %c0_34] : memref<1x1x8x8xf32, #tpu.memory_space<vmem>>, vector<1x1x8x8xf32>
    %78 = vector.shape_cast %77 : vector<1x1x8x8xf32> to vector<8x8xf32>
    %79 = tpu.concatenate %55, %58, %61, %64, %67, %70, %73, %76 in 1 : vector<8x1xf32>, vector<8x1xf32>, vector<8x1xf32>, vector<8x1xf32>, vector<8x1xf32>, vector<8x1xf32>, vector<8x1xf32>, vector<8x1xf32> -> vector<8x8xf32>
    %80 = arith.addf %78, %79 : vector<8x8xf32>
    %c0_35 = arith.constant 0 : index
    %c0_36 = arith.constant 0 : index
    %c0_37 = arith.constant 0 : index
    %c0_38 = arith.constant 0 : index
    %81 = vector.load %arg6[%c0_35, %c0_36, %c0_37, %c0_38] : memref<1x1x8x8xf32, #tpu.memory_space<vmem>>, vector<1x1x8x8xf32>
    %82 = vector.shape_cast %81 : vector<1x1x8x8xf32> to vector<8x8xf32>
    %83 = vector.shape_cast %80 : vector<8x8xf32> to vector<1x1x8x8xf32>
    tpu.vector_store %arg6[%c0_35, %c0_36, %c0_37, %c0_38], %83 {strides = array<i32>} : memref<1x1x8x8xf32, #tpu.memory_space<vmem>>, vector<1x1x8x8xf32>,
    return
  }
  func.func @transform_0(%arg0: i32, %arg1: i32, %arg2: i32) -> (i32, i32, i32) {
    %c1_i32 = arith.constant 1 : i32
    %0 = arith.muli %arg0, %c1_i32 : i32
    %1 = arith.addi %0, %arg2 : i32
    %c0_i32 = arith.constant 0 : i32
    %c0_i32_0 = arith.constant 0 : i32
    return %arg1, %c0_i32, %1 : i32, i32, i32
  }
  func.func @transform_1(%arg0: i32, %arg1: i32, %arg2: i32) -> (i32, i32, i32) {
    %c1_i32 = arith.constant 1 : i32
    %0 = arith.muli %arg0, %c1_i32 : i32
    %1 = arith.addi %0, %arg2 : i32
    %c0_i32 = arith.constant 0 : i32
    %c0_i32_0 = arith.constant 0 : i32
    return %arg1, %c0_i32, %1 : i32, i32, i32
  }
  func.func @transform_2(%arg0: i32, %arg1: i32, %arg2: i32) -> (i32, i32, i32) {
    %c1_i32 = arith.constant 1 : i32
    %0 = arith.muli %arg0, %c1_i32 : i32
    %1 = arith.addi %0, %arg2 : i32
    %c0_i32 = arith.constant 0 : i32
    %c0_i32_0 = arith.constant 0 : i32
    return %arg1, %c0_i32, %1 : i32, i32, i32
  }
  func.func @transform_3(%arg0: i32, %arg1: i32, %arg2: i32) -> (i32, i32, i32, i32) {
    %c0_i32 = arith.constant 0 : i32
    %c0_i32_0 = arith.constant 0 : i32
    %c0_i32_1 = arith.constant 0 : i32
    return %arg0, %arg1, %c0_i32, %c0_i32_0 : i32, i32, i32, i32
  }
}

</mosaic_0001>

<llo_original>
// kernel: tpu_custom_call.1
$region0: #{tpu_custom_call.1}
  #allocation0 [shape = 'u32[]', space=smem, size = 0x4, offset = 0x4, fixed_abs, tag = 'smem constant byte address 0x4 - core index']
  #allocation1 [shape = 'u32[144,128]{1,0:T(1,128)}', space=vmem, size = 0x12000, scoped, tag = 'internal scratch']
  %s0 = inlined_call_operand.hbm [shape: bf16[3,8,256], index: 0, kind: input, shape index: {}]
  %s1 = inlined_call_operand.hbm [shape: bf16[3,8,256], index: 1, kind: input, shape index: {}]
  %s2 = inlined_call_operand.hbm [shape: bf16[3,8,256], index: 2, kind: input, shape index: {}]
  %s3 = inlined_call_operand.hbm [shape: f32[1,3,8,8], index: 3, kind: output, shape index: {}]
  %s4 = sld [smem:[#allocation0]]
  $region61: #{tpu_custom_call.1} parent=0
    _
  %s6 = ssub.s32 1, %s4
  %s7 = scalar_select 0, %s6, %s4
  $region1: #{tpu_custom_call.1} parent=0
    #allocation2 [shape = 'u8[8192]{0}', space=vmem, size = 0x2000, scoped, tag = 'input window, operand 0']
    #allocation3 [shape = 's32[2]{0}', space=sflag, size = 0x8, scoped, tag = 'scoped memory for tpu_custom_call.1']
    #allocation4 [shape = 's32[2]{0}', space=sflag, size = 0x8, scoped, tag = 'scoped memory for tpu_custom_call.1']
    #allocation5 [shape = 'u8[8192]{0}', space=vmem, size = 0x2000, scoped, tag = 'input window, operand 1']
    #allocation6 [shape = 's32[2]{0}', space=sflag, size = 0x8, scoped, tag = 'scoped memory for tpu_custom_call.1']
    #allocation7 [shape = 'u8[8192]{0}', space=vmem, size = 0x2000, scoped, tag = 'input window, operand 2']
    #allocation8 [shape = 'u8[8192]{0}', space=vmem, size = 0x2000, scoped, tag = 'output window, operand 0']
    %8 = vsyncpa [#allocation3], 0
    %s9 = scalar_lea.sflag [#allocation3], 1
    %10 = vsyncpa %s9, 0
    %11 = vsyncpa [#allocation6], 0
    %s12 = scalar_lea.sflag [#allocation6], 1
    %13 = vsyncpa %s12, 0
    %14 = vsyncpa [#allocation4], 0
    %s15 = scalar_lea.sflag [#allocation4], 1
    %16 = vsyncpa %s15, 0
    loop: start=0, step=1, limit=5
    $region2: #{tpu_custom_call.1} parent=1 // loop_pre_header
      _
    $region3: #{tpu_custom_call.1} parent=1 // loop_header
      %s18 = sphi 0, %s22
      %p19 = scmp.ge.s32.totalorder %s18, 5
      %s25 = sphi 0, %s44
      %s26 = sphi 0, %s40
      %s27 = sphi 0, %s36
      %s28 = sphi 0, %s25
      %s29 = sphi 0, %s26
      %s30 = sphi 0, %s27
      %s31 = sphi 0, %s28
      %s32 = sphi 0, %s29
      %s33 = sphi 0, %s30
      %s51 = sphi 0, %s53
      %s54 = sphi 0, %s51
      %s55 = sphi 0, %s54
      %s71 = sphi 0, %s55
      %s81 = sphi 0, %s83
      %s84 = sphi 0, %s81
      %s85 = sphi 0, %s84
      %s101 = sphi 0, %s85
      %s111 = sphi 0, %s113
      %s114 = sphi 0, %s111
      %s115 = sphi 0, %s114
      %s131 = sphi 0, %s115
      %s139 = sphi 0, %s141
      %s142 = sphi 0, %s139
      %s143 = sphi 0, %s142
      %s159 = sphi 0, %s143
    $region4: #{tpu_custom_call.1} parent=1 // loop_header_branch
      %21 = sbr.rel (%p19) target = $region8
    $region5: #{tpu_custom_call.1} parent=1 // loop_body
      %s23 = ssub.s32 %s18, 1
      %s24 = ssub.s32 %s18, 2
      %s34 = sadd.s32 1, %s27
      %p35 = scmp.ge.s32.totalorder %s34, 1
      %s36 = scalar_select %p35, 0, %s34
      %s37 = sadd.s32 1, %s26
      %s38 = scalar_select %p35, %s37, %s26
      %p39 = scmp.ge.s32.totalorder %s38, 3
      %s40 = scalar_select %p39, 0, %s38
      %s41 = sadd.s32 1, %s25
      %s42 = scalar_select %p39, %s41, %s25
      %p43 = scmp.ge.s32.totalorder %s42, 1
      %s44 = scalar_select %p43, 0, %s42
      %s45 = sadd.s32 %s25, %s27
      %s46 = sadd.s32 %s44, %s36
      %s47 = ssub.s32 %s26, %s40
      %s48 = ssub.s32 %s45, %s46
      %s49 = sor.u32 %s47, %s48
      %p50 = scmp.eq.s32.totalorder %s49, 0
      %s52 = sadd.s32 %s51, 1
      %s53 = scalar_select %p50, %s51, %s52
      %p56 = pneg %p50
      %p57 = scmp.eq.s32.totalorder %s18, 2
      %p58 = por %p56, %p57
      %p59 = scmp.ne.s32.totalorder %s51, %s54
      %p60 = scmp.eq.s32.totalorder %s18, 0
      %p61 = por %p59, %p60
      %p62 = scmp.ne.s32.totalorder %s51, %s54
      %p63 = scmp.eq.s32.totalorder %s23, 2
      %p64 = por %p62, %p63
      %p65 = scmp.ne.s32.totalorder %s54, %s55
      %p66 = scmp.eq.s32.totalorder %s23, 0
      %p67 = por %p65, %p66
      %p68 = scmp.ne.s32.totalorder %s54, %s55
      %p69 = scmp.eq.s32.totalorder %s24, 2
      %p70 = por %p68, %p69
      %p72 = scmp.ne.s32.totalorder %s55, %s71
      %p73 = scmp.eq.s32.totalorder %s24, 0
      %p74 = por %p72, %p73
      %s75 = sadd.s32 %s25, %s27
      %s76 = sadd.s32 %s44, %s36
      %s77 = ssub.s32 %s26, %s40
      %s78 = ssub.s32 %s75, %s76
      %s79 = sor.u32 %s77, %s78
      %p80 = scmp.eq.s32.totalorder %s79, 0
      %s82 = sadd.s32 %s81, 1
      %s83 = scalar_select %p80, %s81, %s82
      %p86 = pneg %p80
      %p87 = scmp.eq.s32.totalorder %s18, 2
      %p88 = por %p86, %p87
      %p89 = scmp.ne.s32.totalorder %s81, %s84
      %p90 = scmp.eq.s32.totalorder %s18, 0
      %p91 = por %p89, %p90
      %p92 = scmp.ne.s32.totalorder %s81, %s84
      %p93 = scmp.eq.s32.totalorder %s23, 2
      %p94 = por %p92, %p93
      %p95 = scmp.ne.s32.totalorder %s84, %s85
      %p96 = scmp.eq.s32.totalorder %s23, 0
      %p97 = por %p95, %p96
      %p98 = scmp.ne.s32.totalorder %s84, %s85
      %p99 = scmp.eq.s32.totalorder %s24, 2
      %p100 = por %p98, %p99
      %p102 = scmp.ne.s32.totalorder %s85, %s101
      %p103 = scmp.eq.s32.totalorder %s24, 0
      %p104 = por %p102, %p103
      %s105 = sadd.s32 %s25, %s27
      %s106 = sadd.s32 %s44, %s36
      %s107 = ssub.s32 %s26, %s40
      %s108 = ssub.s32 %s105, %s106
      %s109 = sor.u32 %s107, %s108
      %p110 = scmp.eq.s32.totalorder %s109, 0
      %s112 = sadd.s32 %s111, 1
      %s113 = scalar_select %p110, %s111, %s112
      %p116 = pneg %p110
      %p117 = scmp.eq.s32.totalorder %s18, 2
      %p118 = por %p116, %p117
      %p119 = scmp.ne.s32.totalorder %s111, %s114
      %p120 = scmp.eq.s32.totalorder %s18, 0
      %p121 = por %p119, %p120
      %p122 = scmp.ne.s32.totalorder %s111, %s114
      %p123 = scmp.eq.s32.totalorder %s23, 2
      %p124 = por %p122, %p123
      %p125 = scmp.ne.s32.totalorder %s114, %s115
      %p126 = scmp.eq.s32.totalorder %s23, 0
      %p127 = por %p125, %p126
      %p128 = scmp.ne.s32.totalorder %s114, %s115
      %p129 = scmp.eq.s32.totalorder %s24, 2
      %p130 = por %p128, %p129
      %p132 = scmp.ne.s32.totalorder %s115, %s131
      %p133 = scmp.eq.s32.totalorder %s24, 0
      %p134 = por %p132, %p133
      %s135 = ssub.s32 %s25, %s44
      %s136 = ssub.s32 %s26, %s40
      %s137 = sor.u32 %s135, %s136
      %p138 = scmp.eq.s32.totalorder %s137, 0
      %s140 = sadd.s32 %s139, 1
      %s141 = scalar_select %p138, %s139, %s140
      %p144 = pneg %p138
      %p145 = scmp.eq.s32.totalorder %s18, 2
      %p146 = por %p144, %p145
      %p147 = scmp.ne.s32.totalorder %s139, %s142
      %p148 = scmp.eq.s32.totalorder %s18, 0
      %p149 = por %p147, %p148
      %p150 = scmp.ne.s32.totalorder %s139, %s142
      %p151 = scmp.eq.s32.totalorder %s23, 2
      %p152 = por %p150, %p151
      %p153 = scmp.ne.s32.totalorder %s142, %s143
      %p154 = scmp.eq.s32.totalorder %s23, 0
      %p155 = por %p153, %p154
      %p156 = scmp.ne.s32.totalorder %s142, %s143
      %p157 = scmp.eq.s32.totalorder %s24, 2
      %p158 = por %p156, %p157
      %p160 = scmp.ne.s32.totalorder %s143, %s159
      %p161 = scmp.eq.s32.totalorder %s24, 0
      %p162 = por %p160, %p161
      %p163 = scmp.le.s32.totalorder 1, %s18
      %p164 = scmp.lt.s32.totalorder %s18, 4
      %p165 = pnand %p163, %p164
      %p166 = pneg %p165
      // Predicated region
      $region9: #{tpu_custom_call.1} parent=5 // pred_check
        _
      $region10: #{tpu_custom_call.1} parent=5 // pred_check_branch
        %168 = sbr.rel (%p165) target = $region12
      $region11: #{tpu_custom_call.1} parent=5 // pred_region
        %s169 = ssub.s32 %s18, 1
      $region12: #{tpu_custom_call.1} parent=5 // pred_fallthru
        _
      %p170 = scmp.lt.s32.totalorder %s18, 3
      // Predicated region
      $region13: #{tpu_custom_call.1} parent=5 // pred_check
        %p171 = pneg %p170
      $region14: #{tpu_custom_call.1} parent=5 // pred_check_branch
        %173 = sbr.rel (%p171) target = $region16
      $region15: #{tpu_custom_call.1} parent=5 // pred_region
        // Predicated region
        $region17: #{tpu_custom_call.1} parent=15 // pred_check
          %p174 = pneg %p61
        $region18: #{tpu_custom_call.1} parent=15 // pred_check_branch
          %176 = sbr.rel (%p174) target = $region20
        $region19: #{tpu_custom_call.1} parent=15 // pred_region
          %s177 = sand.u32 %s51, 1
          %s178 = scalar_lea.sflag [#allocation3], %s177
          %s179 = sand.u32 %s51, 1
          %s180 = smul.addr %s179, 8
          %s181 = scalar_lea.vmem [#allocation2], %s180
          %s182 = sadd.s32 %s25, %s27
          %s183 = smul.u32 2, %s182
          %s185 = ssub.s32 128, 128
          %186 = vsyncadd %s178, %s185
          %s187 = smul.addr %s26, 2
          %s188 = sadd.s32 %s183, %s187
          %s189 = smul.addr %s188, 64
          %s190 = scalar_lea.hbm %s0, %s189
          %s192 = sshll.u32 %s181, 4
          %s193 = int_to_ptr.vmem [resolvable:$true] %s192
          %195 = dma.hbm_to_vmem [thread:$0]  %s190, 128, %s193, %s178
        $region20: #{tpu_custom_call.1} parent=15 // pred_fallthru
          _
        // Predicated region
        $region21: #{tpu_custom_call.1} parent=15 // pred_check
          %p196 = pneg %p91
        $region22: #{tpu_custom_call.1} parent=15 // pred_check_branch
          %198 = sbr.rel (%p196) target = $region24
        $region23: #{tpu_custom_call.1} parent=15 // pred_region
          %s199 = sand.u32 %s18, 1
          %s200 = scalar_lea.sflag [#allocation6], %s199
          %s201 = sand.u32 %s81, 1
          %s202 = smul.addr %s201, 8
          %s203 = scalar_lea.vmem [#allocation5], %s202
          %s204 = sadd.s32 %s25, %s27
          %s205 = smul.u32 2, %s204
          %s207 = ssub.s32 128, 128
          %208 = vsyncadd %s200, %s207
          %s209 = smul.addr %s26, 2
          %s210 = sadd.s32 %s205, %s209
          %s211 = smul.addr %s210, 64
          %s212 = scalar_lea.hbm %s1, %s211
          %s214 = sshll.u32 %s203, 4
          %s215 = int_to_ptr.vmem [resolvable:$true] %s214
          %217 = dma.hbm_to_vmem [thread:$0]  %s212, 128, %s215, %s200
        $region24: #{tpu_custom_call.1} parent=15 // pred_fallthru
          _
        // Predicated region
        $region25: #{tpu_custom_call.1} parent=15 // pred_check
          %p218 = pneg %p121
        $region26: #{tpu_custom_call.1} parent=15 // pred_check_branch
          %220 = sbr.rel (%p218) target = $region28
        $region27: #{tpu_custom_call.1} parent=15 // pred_region
          %s221 = sand.u32 %s18, 1
          %s222 = scalar_lea.sflag [#allocation6], %s221
          %s223 = sand.u32 %s111, 1
          %s224 = smul.addr %s223, 8
          %s225 = scalar_lea.vmem [#allocation7], %s224
          %s226 = sadd.s32 %s25, %s27
          %s227 = smul.u32 2, %s226
          %s229 = ssub.s32 128, 128
          %230 = vsyncadd %s222, %s229
          %s231 = smul.addr %s26, 2
          %s232 = sadd.s32 %s227, %s231
          %s233 = smul.addr %s232, 64
          %s234 = scalar_lea.hbm %s2, %s233
          %s236 = sshll.u32 %s225, 4
          %s237 = int_to_ptr.vmem [resolvable:$true] %s236
          %239 = dma.hbm_to_vmem [thread:$0]  %s234, 128, %s237, %s222
        $region28: #{tpu_custom_call.1} parent=15 // pred_fallthru
          _
      $region16: #{tpu_custom_call.1} parent=5 // pred_fallthru
        _
      %p240 = scmp.le.s32.totalorder 1, %s18
      %p241 = scmp.lt.s32.totalorder %s18, 4
      %p242 = pnand %p240, %p241
      %p243 = pneg %p242
      // Predicated region
      $region29: #{tpu_custom_call.1} parent=5 // pred_check
        _
      $region30: #{tpu_custom_call.1} parent=5 // pred_check_branch
        %245 = sbr.rel (%p242) target = $region32
      $region31: #{tpu_custom_call.1} parent=5 // pred_region
        %s246 = ssub.s32 %s18, 1
        %s247 = sand.u32 %s54, 1
        %s248 = scalar_lea.sflag [#allocation3], %s247
        %s249 = sand.u32 %s54, 1
        %s250 = smul.addr %s249, 8
        %s251 = scalar_lea.vmem [#allocation2], %s250
        // Predicated region
        $region33: #{tpu_custom_call.1} parent=31 // pred_check
          %p252 = pneg %p67
        $region34: #{tpu_custom_call.1} parent=31 // pred_check_branch
          %254 = sbr.rel (%p252) target = $region36
        $region35: #{tpu_custom_call.1} parent=31 // pred_region
          %255 = dma.done %s248, 128
        $region36: #{tpu_custom_call.1} parent=31 // pred_fallthru
          _
        %s256 = sand.u32 %s23, 1
        %s257 = scalar_lea.sflag [#allocation6], %s256
        %s258 = sand.u32 %s84, 1
        %s259 = smul.addr %s258, 8
        %s260 = scalar_lea.vmem [#allocation5], %s259
        // Predicated region
        $region37: #{tpu_custom_call.1} parent=31 // pred_check
          %p261 = pneg %p97
        $region38: #{tpu_custom_call.1} parent=31 // pred_check_branch
          %263 = sbr.rel (%p261) target = $region40
        $region39: #{tpu_custom_call.1} parent=31 // pred_region
          %264 = dma.done %s257, 128
        $region40: #{tpu_custom_call.1} parent=31 // pred_fallthru
          _
        %s265 = sand.u32 %s23, 1
        %s266 = scalar_lea.sflag [#allocation6], %s265
        %s267 = sand.u32 %s114, 1
        %s268 = smul.addr %s267, 8
        %s269 = scalar_lea.vmem [#allocation7], %s268
        // Predicated region
        $region41: #{tpu_custom_call.1} parent=31 // pred_check
          %p270 = pneg %p127
        $region42: #{tpu_custom_call.1} parent=31 // pred_check_branch
          %272 = sbr.rel (%p270) target = $region44
        $region43: #{tpu_custom_call.1} parent=31 // pred_region
          %273 = dma.done %s266, 128
        $region44: #{tpu_custom_call.1} parent=31 // pred_fallthru
          _
        %s274 = sand.u32 %s54, 1
        %s275 = scalar_lea.sflag [#allocation3], %s274
        %s276 = sand.u32 %s54, 1
        %s277 = smul.addr %s276, 8
        %s278 = scalar_lea.vmem [#allocation2], %s277
        %p279 = pneg %p67
        %p280 = pneg %p64
        %s281 = sand.u32 %s23, 1
        %s282 = scalar_lea.sflag [#allocation6], %s281
        %s283 = sand.u32 %s84, 1
        %s284 = smul.addr %s283, 8
        %s285 = scalar_lea.vmem [#allocation5], %s284
        %p286 = pneg %p97
        %p287 = pneg %p94
        %s288 = sand.u32 %s23, 1
        %s289 = scalar_lea.sflag [#allocation6], %s288
        %s290 = sand.u32 %s114, 1
        %s291 = smul.addr %s290, 8
        %s292 = scalar_lea.vmem [#allocation7], %s291
        %p293 = pneg %p127
        %p294 = pneg %p124
        %p295 = pneg %p155
        %p296 = pneg %p152
        %s297 = sand.u32 %s142, 1
        %s298 = scalar_lea.sflag [#allocation4], %s297
        %s299 = sand.u32 %s142, 1
        %s300 = smul.addr %s299, 8
        %s301 = scalar_lea.vmem [#allocation8], %s300
        %s302 = sadd.s32 %s28, %s30
        %s303 = smul.u32 2, %s302
        %s304 = sadd.s32 %s28, %s30
        %s305 = smul.u32 2, %s304
        %s306 = sadd.s32 %s28, %s30
        %s307 = smul.u32 2, %s306
        %p308 = scmp.eq.s32.totalorder %s30, 0
        // Predicated region
        $region45: #{tpu_custom_call.1} parent=31 // pred_check
          %p309 = pneg %p308
        $region46: #{tpu_custom_call.1} parent=31 // pred_check_branch
          %311 = sbr.rel (%p309) target = $region48
        $region47: #{tpu_custom_call.1} parent=31 // pred_region
          %vm312 = vcmask 64512
          %313 = vst.msk [vmem:[%s301] sm:$0xff] %vm312, 0.0
        $region48: #{tpu_custom_call.1} parent=31 // pred_fallthru
          _
        %v314 = vld [vmem:[%s251] sm:$0xff]
        %v315 = vunpack.c.l.bf16 %v314
        %v316 = vunpack.c.h.bf16 %v314
        %v317 = vld [vmem:[%s260] sm:$0xff]
        %v318 = vunpack.c.l.bf16 %v317
        %v319 = vunpack.c.h.bf16 %v317
        %v320 = vld [vmem:[%s269] sm:$0xff]
        %v321 = vunpack.c.l.bf16 %v320
        %v322 = vunpack.c.h.bf16 %v320
        %v323 = vand.u32 2147483647, %v315
        %v324 = vand.u32 2147483647, %v316
        %v325 = vsub.f32 0.0, %v323
        %v326 = vsub.f32 0.0, %v324
        %v327 = vmul.f32 %v325, 1.442695
        %v328 = vpow.pop %v327
        %v329 = vmul.f32 %v326, 1.442695
        %v330 = vpow.pop %v329
        %v331 = vadd.f32 %v328, 1.0
        %v332 = vadd.f32 %v330, 1.0
        %v333 = vrcp.pop %v331
        %v334 = vrcp.pop %v332
        %vm335 = vcmp.ge.f32.partialorder %v315, 0.0
        %vm336 = vcmp.ge.f32.partialorder %v316, 0.0
        %v337 = vmul.f32 %v328, %v333
        %v338 = vmul.f32 %v330, %v334
        %v339 = vsel %vm335, %v333, %v337
        %v340 = vsel %vm336, %v334, %v338
        %v341 = vmax.f32 %v315, 0.0
        %v342 = vmax.f32 %v316, 0.0
        %v343 = vmul.f32 %v315, %v318
        %v344 = vmul.f32 %v316, %v319
        %v345 = vsub.f32 %v341, %v343
        %v346 = vsub.f32 %v342, %v344
        %v347 = vadd.f32 %v328, 1.0
        %v348 = vlog2.pop %v347
        %v349 = vmul.f32 %v348, 0.6931472
        %v350 = vmul.f32 -0.5, %v328
        %v351 = vadd.f32 %v350, 1.0
        %v352 = vmul.f32 %v351, %v328
        %v353 = vand.u32 2147483647, %v328
        %vm354 = vcmp.lt.f32.partialorder %v353, 0.0004427343
        %v355 = vsel %vm354, %v352, %v349
        %v356 = vadd.f32 %v330, 1.0
        %v357 = vlog2.pop %v356
        %v358 = vmul.f32 %v357, 0.6931472
        %v359 = vmul.f32 -0.5, %v330
        %v360 = vadd.f32 %v359, 1.0
        %v361 = vmul.f32 %v360, %v330
        %v362 = vand.u32 2147483647, %v330
        %vm363 = vcmp.lt.f32.partialorder %v362, 0.0004427343
        %v364 = vsel %vm363, %v361, %v358
        %v365 = vadd.f32 %v345, %v355
        %v366 = vadd.f32 %v346, %v364
        %v367 = vmul.f32 %v339, %v318
        %v368 = vmul.f32 %v340, %v319
        %v369 = vadd.f32 %v339, %v318
        %v370 = vadd.f32 %v340, %v319
        %v371 = vmul.f32 %v367, 2.0
        %v372 = vmul.f32 %v368, 2.0
        %v373 = vsub.f32 %v369, %v371
        %v374 = vsub.f32 %v370, %v372
        %v375 = vmul.f32 %v373, %v373
        %v376 = vmul.f32 %v374, %v374
        %v377 = vmul.f32 %v365, %v375
        %v378 = vmul.f32 %v366, %v376
        %v379 = vmul.f32 %v318, -0.5
        %v380 = vmul.f32 %v319, -0.5
        %v381 = vadd.f32 %v379, 0.75
        %v382 = vadd.f32 %v380, 0.75
        %v383 = vmul.f32 %v377, %v381
        %v384 = vmul.f32 %v378, %v382
        %v385 = vmul.f32 %v339, %v321
        %v386 = vmul.f32 %v340, %v322
        %v387 = vmul.f32 %v318, %v321
        %v388 = vmul.f32 %v319, %v322
        %v389 = vmul.f32 %v339, %v339
        %v390 = vmul.f32 %v340, %v340
        %v391 = vmul.f32 %v321, %v321
        %v392 = vmul.f32 %v322, %v322
        %v393 = vadd.f32 %v383, %v384
        %394 = vadd.xlane.f32.xlu0 %v393
        %v395 = vpop.xlane.xlu0 %394
        %v396 = vadd.f32 %v395, 0.0
        %v397 = vadd.f32 %v367, %v368
        %398 = vadd.xlane.f32.xlu0 %v397
        %v399 = vpop.xlane.xlu0 %398
        %v400 = vadd.f32 %v399, 0.0
        %v401 = vadd.f32 %v339, %v340
        %402 = vadd.xlane.f32.xlu0 %v401
        %v403 = vpop.xlane.xlu0 %402
        %v404 = vadd.f32 %v403, 0.0
        %v405 = vadd.f32 %v318, %v319
        %406 = vadd.xlane.f32.xlu0 %v405
        %v407 = vpop.xlane.xlu0 %406
        %v408 = vadd.f32 %v407, 0.0
        %v409 = vadd.f32 %v385, %v386
        %410 = vadd.xlane.f32.xlu0 %v409
        %v411 = vpop.xlane.xlu0 %410
        %v412 = vadd.f32 %v411, 0.0
        %v413 = vadd.f32 %v387, %v388
        %414 = vadd.xlane.f32.xlu0 %v413
        %v415 = vpop.xlane.xlu0 %414
        %v416 = vadd.f32 %v415, 0.0
        %v417 = vadd.f32 %v389, %v390
        %418 = vadd.xlane.f32.xlu0 %v417
        %v419 = vpop.xlane.xlu0 %418
        %v420 = vadd.f32 %v419, 0.0
        %v421 = vadd.f32 %v391, %v392
        %422 = vadd.xlane.f32.xlu0 %v421
        %v423 = vpop.xlane.xlu0 %422
        %v424 = vadd.f32 %v423, 0.0
        %v425 = vld [vmem:[%s301] sm:$0xff]
        %vm426 = vcmask 7168
        %v427 = vsel %vm426, %v396, %v400
        %vm428 = vcmask 15360
        %v429 = vsel %vm428, %v427, %v404
        %vm430 = vcmask 23552
        %v431 = vsel %vm430, %v429, %v408
        %vm432 = vcmask 31744
        %v433 = vsel %vm432, %v431, %v412
        %vm434 = vcmask 39936
        %v435 = vsel %vm434, %v433, %v416
        %vm436 = vcmask 48128
        %v437 = vsel %vm436, %v435, %v420
        %vm438 = vcmask 56320
        %v439 = vsel %vm438, %v437, %v424
        %v440 = vadd.f32 %v425, %v439
        %vm441 = vcmask 64512
        %442 = vst.msk [vmem:[%s301] sm:$0xff] %vm441, %v440
        %s443 = sand.u32 %s142, 1
        %s444 = scalar_lea.sflag [#allocation4], %s443
        %s445 = sand.u32 %s142, 1
        %s446 = smul.addr %s445, 8
        %s447 = scalar_lea.vmem [#allocation8], %s446
        // Predicated region
        $region49: #{tpu_custom_call.1} parent=31 // pred_check
          %p448 = pneg %p152
        $region50: #{tpu_custom_call.1} parent=31 // pred_check_branch
          %450 = sbr.rel (%p448) target = $region52
        $region51: #{tpu_custom_call.1} parent=31 // pred_region
          %s452 = ssub.s32 128, 128
          %453 = vsyncadd %s444, %s452
          %s454 = smul.addr %s28, 3
          %s455 = sadd.s32 %s29, %s454
          %s456 = smul.addr %s455, 128
          %s457 = scalar_lea.hbm %s3, %s456
          %s459 = sshll.u32 %s447, 4
          %s460 = int_to_ptr.vmem [resolvable:$true] %s459
          %462 = dma.vmem_to_hbm [thread:$0]  %s460, 128, %s457, %s444
        $region52: #{tpu_custom_call.1} parent=31 // pred_fallthru
          _
      $region32: #{tpu_custom_call.1} parent=5 // pred_fallthru
        _
      %p463 = scmp.le.s32.totalorder 2, %s18
      // Predicated region
      $region53: #{tpu_custom_call.1} parent=5 // pred_check
        %p464 = pneg %p463
      $region54: #{tpu_custom_call.1} parent=5 // pred_check_branch
        %466 = sbr.rel (%p464) target = $region56
      $region55: #{tpu_custom_call.1} parent=5 // pred_region
        %s467 = ssub.s32 %s18, 2
        // Predicated region
        $region57: #{tpu_custom_call.1} parent=55 // pred_check
          %p468 = pneg %p158
        $region58: #{tpu_custom_call.1} parent=55 // pred_check_branch
          %470 = sbr.rel (%p468) target = $region60
        $region59: #{tpu_custom_call.1} parent=55 // pred_region
          %s471 = sand.u32 %s143, 1
          %s472 = scalar_lea.sflag [#allocation4], %s471
          %s473 = sand.u32 %s143, 1
          %s474 = smul.addr %s473, 8
          %s475 = scalar_lea.vmem [#allocation8], %s474
          %476 = dma.done %s472, 128
        $region60: #{tpu_custom_call.1} parent=55 // pred_fallthru
          _
      $region56: #{tpu_custom_call.1} parent=5 // pred_fallthru
        _
    $region6: #{tpu_custom_call.1} parent=1 // loop_footer
      %s22 = sadd.s32 1, %s18
    $region7: #{tpu_custom_call.1} parent=1 // loop_footer_branch
      %17 = sbr.rel target = $region3
    $region8: #{tpu_custom_call.1} parent=1 // loop_exit
      _
    %477 = vsyncpa [#allocation3], 1
    %s478 = scalar_lea.sflag [#allocation3], 1
    %479 = vsyncpa %s478, 1
    %480 = vsyncpa [#allocation6], 1
    %s481 = scalar_lea.sflag [#allocation6], 1
    %482 = vsyncpa %s481, 1
    %483 = vsyncpa [#allocation4], 1
    %s484 = scalar_lea.sflag [#allocation4], 1
    %485 = vsyncpa %s484, 1

</llo_original>
